<compile_context>
chip_gen: v7x
topology: tpu7x:2x2x1
jax: 0.10.0
libtpu: 0.0.40
codegen_flags: <defaults>
</compile_context>

<pallas_src>
import functools

import jax
import jax.numpy as jnp
from jax.experimental import pallas as pl
from jax.experimental.pallas import tpu as pltpu

EPS = 1e-5


def residual_block_kernel(x_ref, w_ref, b_ref, g_ref, be_ref, a_ref, o_ref,
                          taps_ref, mom_ref, *, H, W, taps):
    # x_ref   : (C_in, BW)      lane-dense input block (also the residual);
    #                           BW = images_per_block * H * W
    # w_ref   : (C_out, K_pad)  conv weights, 3x3 taps concatenated along K,
    #                           zero-padded to a multiple of 8
    # b_ref   : (C_out, 1)      conv bias
    # g_ref   : (1, BW)         LayerNorm gamma tiled per W-row
    # be_ref  : (1, BW)         LayerNorm beta  tiled per W-row
    # a_ref   : (C_out, 1)      PReLU slopes
    # o_ref   : (C_out, BW)     output block (lane-dense, multiple of 128)
    # taps_ref: (K_pad, BW)     VMEM scratch: rolled+masked tap copies of x
    # mom_ref : (2*C_out, BW)   VMEM scratch: [conv ; conv*conv]
    c_in, bw = x_ref.shape
    c_out = w_ref.shape[0]
    k_pad = w_ref.shape[1]
    hw = H * W

    x2 = x_ref[...].astype(jnp.float32)

    # Per-lane (h, w) coordinates, generated in-kernel (no mask tensor in HBM).
    pos = jax.lax.broadcasted_iota(jnp.int32, (1, bw), 1)
    p_img = pos % hw                     # position inside its own image
    hh = p_img // W
    ww = p_img % W

    # ---- 3x3 conv as ONE K=9*C_in MXU matmul --------------------------------
    # Each tap is a lane-rolled copy of x with out-of-image positions zeroed,
    # stored into the scratch at a static sublane offset (no relayout).
    for t, (dh, dw, shift) in enumerate(taps):
        shifted = x2 if shift == 0 else pltpu.roll(x2, shift, axis=1)
        if dh == 0 and dw == 0:
            masked = shifted
        else:
            valid = ((hh + dh >= 0) & (hh + dh < H) &
                     (ww + dw >= 0) & (ww + dw < W))
            masked = shifted * valid.astype(jnp.float32)
        taps_ref[t * c_in:(t + 1) * c_in, :] = masked
    if k_pad > 9 * c_in:                 # zero K-padding rows (LHS cols are 0)
        taps_ref[9 * c_in:, :] = jnp.zeros((k_pad - 9 * c_in, bw), jnp.float32)

    conv = jnp.dot(w_ref[...].astype(jnp.float32), taps_ref[...],
                   preferred_element_type=jnp.float32) + b_ref[...]

    # ---- LayerNorm over every W-segment of the fused lane axis --------------
    # One MXU pass computes both moments: stack [conv ; conv^2] along sublanes
    # (8 rows = one full f32 sublane tile), contract with a thin lane->segment
    # selector, broadcast back with its transpose.  Both selectors are built
    # in-kernel from iota compares (no HBM traffic, no (HW,HW) matrix).
    n_seg = bw // W
    mom_ref[0:c_out, :] = conv
    mom_ref[c_out:2 * c_out, :] = conv * conv

    lane_seg_r = jax.lax.broadcasted_iota(jnp.int32, (bw, n_seg), 0) // W
    seg_col = jax.lax.broadcasted_iota(jnp.int32, (bw, n_seg), 1)
    sel = (lane_seg_r == seg_col).astype(jnp.float32)           # (BW, n_seg)
    seg_row = jax.lax.broadcasted_iota(jnp.int32, (n_seg, bw), 0)
    lane_seg_c = jax.lax.broadcasted_iota(jnp.int32, (n_seg, bw), 1) // W
    sel_t = (seg_row == lane_seg_c).astype(jnp.float32)         # (n_seg, BW)

    stats = jnp.dot(mom_ref[...], sel,
                    preferred_element_type=jnp.float32) * (1.0 / W)
    stats_b = jnp.dot(stats, sel_t, preferred_element_type=jnp.float32)
    mean = stats_b[0:c_out, :]
    var = jnp.maximum(stats_b[c_out:2 * c_out, :] - mean * mean, 0.0)

    y = (conv - mean) * jax.lax.rsqrt(var + EPS)
    y = y * g_ref[...] + be_ref[...]

    # Channel-wise PReLU + residual add.
    y = jnp.where(y >= 0.0, y, a_ref[...] * y)
    o_ref[...] = (y + x2).astype(o_ref.dtype)


@functools.lru_cache(maxsize=None)
def _roll_sign():
    """Resolve pltpu.roll's direction convention ONCE (cached).

    Returns -1 if pltpu.roll matches jnp.roll (result[i] = x[i - shift]),
    +1 for the reversed convention.  Must be first called outside jit
    (the demo wrapper is not jitted, so the single probe runs eagerly).
    """
    def probe_kernel(x_ref, o_ref):
        o_ref[...] = pltpu.roll(x_ref[...], 1, axis=1)

    x = jax.lax.broadcasted_iota(jnp.float32, (8, 128), 1)
    r = pl.pallas_call(
        probe_kernel,
        out_shape=jax.ShapeDtypeStruct((8, 128), jnp.float32),
    )(x)
    first = float(r[0, 0])
    if first == 127.0:
        return -1
    if first == 1.0:
        return 1
    raise AssertionError(f"unexpected pltpu.roll behavior: r[0,0]={first}")


def residual_block(x, conv_w, conv_b, gamma, beta, alpha, *, lane_chunks=1):
    N, C_in, H, W = x.shape
    C_out = conv_w.shape[0]
    assert C_in == C_out, "residual add requires in_channels == out_channels"
    assert gamma.shape == (W,) and beta.shape == (W,), "norm_width must equal W"
    assert N % lane_chunks == 0, "lane_chunks must divide the batch"
    HW = H * W
    n_per = N // lane_chunks          # whole images per grid step
    BW = n_per * HW                   # lanes per block (multiple of 128 here)

    # Batch folded into the lane axis: (C, N*H*W).  One small XLA transpose
    # each way (not free, but ~8 KiB here); buys full lane occupancy and a
    # single (or 2-way parallel) grid step.
    x_cn = jnp.transpose(x.reshape(N, C_in, HW), (1, 0, 2)).reshape(C_in, N * HW)

    # Conv weights with the 9 taps concatenated along K (column = t*C_in + ci,
    # t = kh*3 + kw), zero-padded to a sublane-aligned K.
    w_taps = conv_w.transpose(2, 3, 0, 1).reshape(9, C_out, C_in)
    w_cat = jnp.transpose(w_taps, (1, 0, 2)).reshape(C_out, 9 * C_in)
    K_pad = ((9 * C_in + 7) // 8) * 8
    w_cat = jnp.pad(w_cat, ((0, 0), (0, K_pad - 9 * C_in))).astype(jnp.float32)

    # Static per-tap lane shifts (taken mod the block width); roll direction
    # resolved once at first call and cached.
    sign = _roll_sign()
    taps = tuple(
        (kh - 1, kw - 1, int((sign * ((kh - 1) * W + (kw - 1))) % BW))
        for kh in range(3) for kw in range(3))

    b2 = conv_b.reshape(C_out, 1).astype(jnp.float32)
    g2 = jnp.tile(gamma, BW // W).reshape(1, BW).astype(jnp.float32)
    be2 = jnp.tile(beta, BW // W).reshape(1, BW).astype(jnp.float32)
    a2 = alpha.reshape(C_out, 1).astype(jnp.float32)

    kernel = functools.partial(residual_block_kernel, H=H, W=W, taps=taps)

    out_cn = pl.pallas_call(
        kernel,
        out_shape=jax.ShapeDtypeStruct((C_out, N * HW), x.dtype),
        grid_spec=pltpu.PrefetchScalarGridSpec(
            num_scalar_prefetch=0,
            grid=(lane_chunks,),
            in_specs=[
                pl.BlockSpec((C_in, BW), lambda i: (0, i)),     # x (residual)
                pl.BlockSpec((C_out, K_pad), lambda i: (0, 0)),  # conv weights
                pl.BlockSpec((C_out, 1), lambda i: (0, 0)),      # conv bias
                pl.BlockSpec((1, BW), lambda i: (0, 0)),         # gamma (tiled)
                pl.BlockSpec((1, BW), lambda i: (0, 0)),         # beta  (tiled)
                pl.BlockSpec((C_out, 1), lambda i: (0, 0)),      # PReLU slopes
            ],
            out_specs=pl.BlockSpec((C_out, BW), lambda i: (0, i)),
            scratch_shapes=[
                pltpu.VMEM((K_pad, BW), jnp.float32),            # stacked taps
                pltpu.VMEM((2 * C_out, BW), jnp.float32),        # [conv; conv^2]
            ],
        ),
        compiler_params=pltpu.CompilerParams(
            dimension_semantics=("parallel",),   # lane_chunks=2 -> v7x megacore
            vmem_limit_bytes=32 * 1024 * 1024,   # half of v7x's 64 MiB per TC
        ),
    )(x_cn, w_cat, b2, g2, be2, a2)

    out = jnp.transpose(out_cn.reshape(C_out, N, HW), (1, 0, 2))
    return out.reshape(N, C_out, H, W)


def reference(x, conv_w, conv_b, gamma, beta, alpha):
    conv = jax.lax.conv_general_dilated(
        x, conv_w, window_strides=(1, 1), padding=((1, 1), (1, 1)),
        dimension_numbers=("NCHW", "OIHW", "NCHW"))
    conv = conv + conv_b[None, :, None, None]
    mean = jnp.mean(conv, axis=-1, keepdims=True)
    var = jnp.var(conv, axis=-1, keepdims=True)
    y = (conv - mean) / jnp.sqrt(var + EPS) * gamma + beta
    y = jnp.where(y >= 0, y, alpha[None, :, None, None] * y)
    return y + x


if __name__ == "__main__":
    N, C, H, W = 2, 4, 16, 16      # in_ch = out_ch = 4, norm_width = W = 16
    key = jax.random.PRNGKey(0)
    k1, k2, k3, k4, k5 = jax.random.split(key, 5)

    x = jax.random.normal(k1, (N, C, H, W), jnp.float32)
    conv_w = 0.1 * jax.random.normal(k2, (C, C, 3, 3), jnp.float32)
    conv_b = 0.1 * jax.random.normal(k3, (C,), jnp.float32)
    gamma = jnp.ones((W,), jnp.float32) + 0.1 * jax.random.normal(k4, (W,), jnp.float32)
    beta = 0.1 * jax.random.normal(k5, (W,), jnp.float32)
    alpha = jnp.full((C,), 0.25, jnp.float32)   # PReLU default init

    out = residual_block(x, conv_w, conv_b, gamma, beta, alpha)
    out = jax.block_until_ready(out)

    ref = reference(x, conv_w, conv_b, gamma, beta, alpha)
    assert out.shape == (N, C, H, W)
    max_diff = jnp.max(jnp.abs(out - ref))
    assert jnp.allclose(out, ref, atol=2e-3, rtol=2e-3), f"max abs diff = {max_diff}"

    print("KERNEL_OK")
</pallas_src>

<mosaic_0001>
module attributes {stable_mosaic.version = 11 : i64} {
  func.func @probe_kernel(%arg0: memref<8x128xf32, #tpu.memory_space<vmem>>, %arg1: memref<8x128xf32, #tpu.memory_space<vmem>>) attributes {dimension_semantics = [], scalar_prefetch = 0 : i64, scratch_operands = 0 : i64, tpu.core_type = #tpu.core_type<tc>} {
    %c0 = arith.constant 0 : index
    %c0_0 = arith.constant 0 : index
    %0 = vector.load %arg0[%c0, %c0_0] : memref<8x128xf32, #tpu.memory_space<vmem>>, vector<8x128xf32>
    %c1_i32 = arith.constant 1 : i32
    %1 = tpu.dynamic_rotate %0 by %c1_i32 dim 1 : vector<8x128xf32>, i32 -> vector<8x128xf32>
    %c0_1 = arith.constant 0 : index
    %c0_2 = arith.constant 0 : index
    %2 = vector.load %arg1[%c0_1, %c0_2] : memref<8x128xf32, #tpu.memory_space<vmem>>, vector<8x128xf32>
    tpu.vector_store %arg1[%c0_1, %c0_2], %1 {strides = array<i32>} : memref<8x128xf32, #tpu.memory_space<vmem>>, vector<8x128xf32>,
    return
  }
}

</mosaic_0001>

<llo_original>
// kernel: tpu_custom_call.1
$region0: #{tpu_custom_call.1}
  #allocation0 [shape = 'u32[]', space=smem, size = 0x4, offset = 0x4, fixed_abs, tag = 'smem constant byte address 0x4 - core index']
  #allocation1 [shape = 'u32[144,128]{1,0:T(1,128)}', space=vmem, size = 0x12000, scoped, tag = 'internal scratch']
  %s0 = inlined_call_operand.hbm [shape: f32[8,128], index: 0, kind: input, shape index: {}]
  %s1 = inlined_call_operand.hbm [shape: f32[8,128], index: 1, kind: output, shape index: {}]
  %s2 = sld [smem:[#allocation0]]
  $region18: #{tpu_custom_call.1} parent=0
    _
  %s4 = ssub.s32 1, %s2
  %s5 = scalar_select 0, %s4, %s2
  $region1: #{tpu_custom_call.1} parent=0
    #allocation2 [shape = 'u8[4096]{0}', space=vmem, size = 0x1000, scoped, tag = 'input window, operand 0, single buffered']
    #allocation3 [shape = 's32[1]{0}', space=sflag, size = 0x4, scoped, tag = 'scoped memory for tpu_custom_call.1']
    #allocation4 [shape = 's32[1]{0}', space=sflag, size = 0x4, scoped, tag = 'scoped memory for tpu_custom_call.1']
    #allocation5 [shape = 'u8[4096]{0}', space=vmem, size = 0x1000, scoped, tag = 'output window, operand 0, single buffered']
    %6 = vsyncpa [#allocation3], 0
    %7 = vsyncpa [#allocation4], 0
    // Predicated region
    $region2: #{tpu_custom_call.1} parent=1 // pred_check
      _
    $region3: #{tpu_custom_call.1} parent=1 // pred_check_branch
      %9 = sbr.rel (0) target = $region5
    $region4: #{tpu_custom_call.1} parent=1 // pred_region
      %s11 = ssub.s32 128, 128
      %12 = vsyncadd [#allocation3], %s11
      %s14 = sshll.u32 [#allocation2], 4
      %s15 = int_to_ptr.vmem [resolvable:$true] %s14
      %17 = dma.hbm_to_vmem [thread:$0]  %s0, 128, %s15, [#allocation3]
    $region5: #{tpu_custom_call.1} parent=1 // pred_fallthru
      _
    // Predicated region
    $region6: #{tpu_custom_call.1} parent=1 // pred_check
      _
    $region7: #{tpu_custom_call.1} parent=1 // pred_check_branch
      %19 = sbr.rel (0) target = $region9
    $region8: #{tpu_custom_call.1} parent=1 // pred_region
      %20 = dma.done [#allocation3], 128
    $region9: #{tpu_custom_call.1} parent=1 // pred_fallthru
      _
    %v21 = vld [vmem:[#allocation2] sm:$0xff]
    %22 = vrot.lane.b32.xlu0 %v21, 1
    %v23 = vpop.permute.xlu0 %22
    %24 = vst [vmem:[#allocation5] sm:$0xff] %v23
    // Predicated region
    $region10: #{tpu_custom_call.1} parent=1 // pred_check
      _
    $region11: #{tpu_custom_call.1} parent=1 // pred_check_branch
      %26 = sbr.rel (0) target = $region13
    $region12: #{tpu_custom_call.1} parent=1 // pred_region
      %s28 = ssub.s32 128, 128
      %29 = vsyncadd [#allocation4], %s28
      %s31 = sshll.u32 [#allocation5], 4
      %s32 = int_to_ptr.vmem [resolvable:$true] %s31
      %34 = dma.vmem_to_hbm [thread:$0]  %s32, 128, %s1, [#allocation4]
    $region13: #{tpu_custom_call.1} parent=1 // pred_fallthru
      _
    // Predicated region
    $region14: #{tpu_custom_call.1} parent=1 // pred_check
      _
    $region15: #{tpu_custom_call.1} parent=1 // pred_check_branch
      %36 = sbr.rel (0) target = $region17
    $region16: #{tpu_custom_call.1} parent=1 // pred_region
      %37 = dma.done [#allocation4], 128
    $region17: #{tpu_custom_call.1} parent=1 // pred_fallthru
      _
    %38 = vsyncpa [#allocation3], 1
    %39 = vsyncpa [#allocation4], 1

</llo_original>
